<compile_context>
chip_gen: v7x
topology: tpu7x:2x2x1
jax: 0.10.0
libtpu: 0.0.40
codegen_flags: <defaults>
</compile_context>

<pallas_src>
import functools

import jax
import jax.numpy as jnp
from jax import lax
from jax.experimental import pallas as pl
from jax.experimental.pallas import tpu as pltpu


def _round_up(n, m):
    return ((n + m - 1) // m) * m


def qnetwork_kernel(xi_ref, yi_ref, act_ref, slab_ref, out_ref, *, mxp, myp, ap):
    """Fused QNetwork forward for one batch tile.

    xi_ref  : (B_BLOCK, 1)    int32  x position indices
    yi_ref  : (B_BLOCK, 1)    int32  y position indices
    act_ref : (B_BLOCK, Ap)   f32    actions (lane-padded 6 -> 8)
    slab_ref: (R_pad, H_pad)  f32    rows [0:MXp)        x_tab @ W1   (folded)
                                     rows [MXp:MXp+MYp)  y_tab @ W1   (folded)
                                     rows [.. : ..+Ap)   wa    @ W1   (folded)
                                     row  ob             b1' = ba @ W1 + b1
                                     row  ob+1           w2 (as a row)
                                     row  ob+2           b2 in lane 0
    out_ref : (B_BLOCK, 1)    f32    Q values (narrow store, minimal bytes)
    """
    o_a = mxp + myp
    o_b = o_a + ap
    w1x = slab_ref[0:mxp, :]                      # (MXp, H_pad)
    w1y = slab_ref[mxp:o_a, :]                    # (MYp, H_pad)
    w1a = slab_ref[o_a:o_b, :]                    # (Ap,  H_pad)
    b1 = slab_ref[o_b:o_b + 1, :]                 # (1, H_pad)
    w2 = slab_ref[o_b + 1:o_b + 2, :]             # (1, H_pad)
    b2 = slab_ref[o_b + 2:o_b + 3, 0:1]           # (1, 1)

    bb = xi_ref.shape[0]

    # One-hot built in-kernel on the VPU (iota == index), then MXU gather-matmul.
    x_oh = (lax.broadcasted_iota(jnp.int32, (bb, mxp), 1)
            == xi_ref[...]).astype(jnp.float32)   # (B, MXp)
    y_oh = (lax.broadcasted_iota(jnp.int32, (bb, myp), 1)
            == yi_ref[...]).astype(jnp.float32)   # (B, MYp)

    # First Linear (folded into the tables): three small MXU passes, f32 accumulate.
    h = jnp.dot(x_oh, w1x, preferred_element_type=jnp.float32)
    h = h + jnp.dot(y_oh, w1y, preferred_element_type=jnp.float32)
    h = h + jnp.dot(act_ref[...], w1a, preferred_element_type=jnp.float32)
    h = jnp.maximum(h + b1, 0.0)                  # (B, H_pad), ReLU

    # Final H->1 projection: VPU multiply + lane reduce; narrow (B,1) store.
    q = jnp.sum(h * w2, axis=-1, keepdims=True) + b2
    out_ref[...] = q


def init_params(key, *, num_actions, out_channels, hidden_dim, max_x, max_y):
    ks = jax.random.split(key, 8)
    s = 0.1
    return {
        "x_tab": s * jax.random.normal(ks[0], (max_x, out_channels), jnp.float32),
        "y_tab": s * jax.random.normal(ks[1], (max_y, out_channels), jnp.float32),
        "wa":    s * jax.random.normal(ks[2], (num_actions, out_channels), jnp.float32),
        "ba":    s * jax.random.normal(ks[3], (1, out_channels), jnp.float32),
        "w1":    s * jax.random.normal(ks[4], (out_channels, hidden_dim), jnp.float32),
        "b1":    s * jax.random.normal(ks[5], (1, hidden_dim), jnp.float32),
        "w2":    s * jax.random.normal(ks[6], (hidden_dim, 1), jnp.float32),
        "b2":    s * jax.random.normal(ks[7], (1, 1), jnp.float32),
    }


def pack_qnetwork_params(params):
    """One-time wrapper-side fold + pack: W1/b1 folded into the tables, everything
    packed into a single small f32 slab (one resident parameter DMA per call)."""
    x_tab, y_tab = params["x_tab"], params["y_tab"]
    wa, ba = params["wa"], params["ba"]
    w1, b1 = params["w1"], params["b1"]
    w2, b2 = params["w2"], params["b2"]

    max_x, max_y = x_tab.shape[0], y_tab.shape[0]
    A = wa.shape[0]
    H = w1.shape[1]

    MXp = _round_up(max_x, 8)
    MYp = _round_up(max_y, 8)
    Ap = _round_up(A, 8)
    Hp = _round_up(H, 128)
    ob = MXp + MYp + Ap
    Rp = _round_up(ob + 3, 8)

    # Fold the first Linear into the tables (kept in f32 to preserve accumulation).
    w1x = (x_tab @ w1).astype(jnp.float32)
    w1y = (y_tab @ w1).astype(jnp.float32)
    w1a = (wa @ w1).astype(jnp.float32)
    b1f = (ba @ w1 + b1).reshape(-1).astype(jnp.float32)

    slab = jnp.zeros((Rp, Hp), jnp.float32)
    slab = slab.at[0:max_x, :H].set(w1x)
    slab = slab.at[MXp:MXp + max_y, :H].set(w1y)
    slab = slab.at[MXp + MYp:MXp + MYp + A, :H].set(w1a)
    slab = slab.at[ob, :H].set(b1f)
    slab = slab.at[ob + 1, :H].set(w2[:, 0].astype(jnp.float32))
    slab = slab.at[ob + 2, 0].set(jnp.float32(b2.reshape(())))

    meta = dict(max_x=max_x, max_y=max_y, num_actions=A,
                MXp=MXp, MYp=MYp, Ap=Ap, Hp=Hp, Rp=Rp)
    return slab, meta


def make_qnetwork_forward(meta, *, max_block=1024):
    """Returns a jitted forward(slab, state, actions) -> (B, 1)."""
    MXp, MYp, Ap = meta["MXp"], meta["MYp"], meta["Ap"]
    Hp, Rp = meta["Hp"], meta["Rp"]
    A = meta["num_actions"]

    kernel = functools.partial(qnetwork_kernel, mxp=MXp, myp=MYp, ap=Ap)

    @jax.jit
    def forward(slab, state, actions):
        obs, stam, x, y = state
        del obs, stam  # dead code in the reference forward

        # Mirror the PyTorch shape handling.
        if actions.ndim == 1:
            actions = actions[None, :]
        actions = actions.astype(jnp.float32)
        x = jnp.asarray(x, jnp.int32).reshape(-1, 1)
        y = jnp.asarray(y, jnp.int32).reshape(-1, 1)
        B = actions.shape[0]

        # Batch tiling: big 1024-row blocks; even grid length when tiled so the
        # "parallel" axis can shard across v7x's two TensorCores.
        B_pad = _round_up(max(B, 1), 8)
        if B_pad <= max_block:
            b_block = B_pad
            n_blocks = 1
        else:
            b_block = max_block
            n_blocks = pl.cdiv(B_pad, b_block)
            if n_blocks % 2:
                n_blocks += 1
            B_pad = n_blocks * b_block

        xi = jnp.pad(x, ((0, B_pad - B), (0, 0)))
        yi = jnp.pad(y, ((0, B_pad - B), (0, 0)))
        act = jnp.pad(actions, ((0, B_pad - B), (0, Ap - A)))

        flops = 2 * B_pad * (MXp + MYp + Ap) * Hp + 4 * B_pad * Hp
        bytes_accessed = 4 * (2 * B_pad + B_pad * Ap + Rp * Hp + B_pad)

        out = pl.pallas_call(
            kernel,
            out_shape=jax.ShapeDtypeStruct((B_pad, 1), jnp.float32),
            grid_spec=pltpu.PrefetchScalarGridSpec(
                num_scalar_prefetch=0,
                grid=(n_blocks,),
                in_specs=[
                    pl.BlockSpec((b_block, 1), lambda i: (i, 0)),   # x indices
                    pl.BlockSpec((b_block, 1), lambda i: (i, 0)),   # y indices
                    pl.BlockSpec((b_block, Ap), lambda i: (i, 0)),  # actions
                    pl.BlockSpec((Rp, Hp), lambda i: (0, 0)),       # resident slab
                ],
                out_specs=pl.BlockSpec((b_block, 1), lambda i: (i, 0)),
            ),
            compiler_params=pltpu.CompilerParams(
                dimension_semantics=("parallel",)),
            cost_estimate=pl.CostEstimate(
                flops=flops, transcendentals=0, bytes_accessed=bytes_accessed),
        )(xi, yi, act, slab)

        return out[:B]  # padded garbage rows dropped here

    return forward


if __name__ == "__main__":
    # Small config consistent with the module's __init__.
    B = 2
    in_channels, hidden_channels, out_channels = 4, 8, 32
    num_actions, hidden_dim = 6, 32
    max_stamina, max_x, max_y = 10, 16, 16
    Hs = Ws = 16

    key = jax.random.PRNGKey(0)
    k_params, k_obs, k_act, k_x, k_y, k_s = jax.random.split(key, 6)

    params = init_params(k_params, num_actions=num_actions,
                         out_channels=out_channels, hidden_dim=hidden_dim,
                         max_x=max_x, max_y=max_y)
    slab, meta = pack_qnetwork_params(params)
    forward = make_qnetwork_forward(meta)

    obs = jax.random.normal(k_obs, (B, in_channels, Hs, Ws), jnp.float32)  # unused downstream
    actions = jax.random.normal(k_act, (B, num_actions), jnp.float32)
    x_idx = jax.random.randint(k_x, (B,), 0, max_x, jnp.int32)
    y_idx = jax.random.randint(k_y, (B,), 0, max_y, jnp.int32)
    stam = jax.random.randint(k_s, (B,), 0, max_stamina, jnp.int32)

    out = forward(slab, (obs, stam, x_idx, y_idx), actions)
    jax.block_until_ready(out)

    # Sanity check against a pure-JAX reference of the same (unfolded) semantics.
    x_emb = params["x_tab"][x_idx]
    y_emb = params["y_tab"][y_idx]
    a_emb = actions @ params["wa"] + params["ba"]
    feats = x_emb + y_emb + a_emb
    ref = jnp.maximum(feats @ params["w1"] + params["b1"], 0.0) @ params["w2"] + params["b2"]
    assert out.shape == (B, 1)
    assert jnp.allclose(out, ref, atol=1e-5, rtol=1e-5)

    print("KERNEL_OK")
</pallas_src>

<mosaic_0001>
module attributes {stable_mosaic.version = 11 : i64} {
  func.func @qnetwork_kernel(%arg0: i32, %arg1: memref<8x1xi32, #tpu.memory_space<vmem>>, %arg2: memref<8x1xi32, #tpu.memory_space<vmem>>, %arg3: memref<8x8xf32, #tpu.memory_space<vmem>>, %arg4: memref<48x128xf32, #tpu.memory_space<vmem>>, %arg5: memref<8x1xf32, #tpu.memory_space<vmem>>) attributes {dimension_semantics = [#tpu.dimension_semantics<parallel>], iteration_bounds = array<i64: 1>, scalar_prefetch = 0 : i64, scratch_operands = 0 : i64, tpu.core_type = #tpu.core_type<tc>, window_params = [{transform_indices = @transform_0, window_bounds = array<i64: 8, 1>}, {transform_indices = @transform_1, window_bounds = array<i64: 8, 1>}, {transform_indices = @transform_2, window_bounds = array<i64: 8, 8>}, {pipeline_mode = #tpu.pipeline_mode<synchronous>, transform_indices = @transform_3, window_bounds = array<i64: 48, 128>}, {transform_indices = @transform_4, window_bounds = array<i64: 8, 1>}]} {
    %c0 = arith.constant 0 : index
    %c0_0 = arith.constant 0 : index
    %0 = vector.load %arg4[%c0, %c0_0] : memref<48x128xf32, #tpu.memory_space<vmem>>, vector<16x128xf32>
    %c16 = arith.constant 16 : index
    %c0_1 = arith.constant 0 : index
    %1 = vector.load %arg4[%c16, %c0_1] : memref<48x128xf32, #tpu.memory_space<vmem>>, vector<16x128xf32>
    %c32 = arith.constant 32 : index
    %c0_2 = arith.constant 0 : index
    %2 = vector.load %arg4[%c32, %c0_2] : memref<48x128xf32, #tpu.memory_space<vmem>>, vector<8x128xf32>
    %c40 = arith.constant 40 : index
    %c0_3 = arith.constant 0 : index
    %3 = vector.load %arg4[%c40, %c0_3] : memref<48x128xf32, #tpu.memory_space<vmem>>, vector<1x128xf32>
    %c41 = arith.constant 41 : index
    %c0_4 = arith.constant 0 : index
    %4 = vector.load %arg4[%c41, %c0_4] : memref<48x128xf32, #tpu.memory_space<vmem>>, vector<1x128xf32>
    %c42 = arith.constant 42 : index
    %c0_5 = arith.constant 0 : index
    %5 = vector.load %arg4[%c42, %c0_5] : memref<48x128xf32, #tpu.memory_space<vmem>>, vector<1x1xf32>
    %6 = tpu.iota {dimensions = array<i32: 1>} : vector<8x16xi32>
    %c0_6 = arith.constant 0 : index
    %c0_7 = arith.constant 0 : index
    %7 = vector.load %arg1[%c0_6, %c0_7] : memref<8x1xi32, #tpu.memory_space<vmem>>, vector<8x1xi32>
    %8 = vector.broadcast %7 : vector<8x1xi32> to vector<8x16xi32>
    %9 = arith.cmpi eq, %6, %8 : vector<8x16xi32>
    %10 = arith.extui %9 : vector<8x16xi1> to vector<8x16xi32>
    %11 = arith.sitofp %10 : vector<8x16xi32> to vector<8x16xf32>
    %12 = tpu.iota {dimensions = array<i32: 1>} : vector<8x16xi32>
    %c0_8 = arith.constant 0 : index
    %c0_9 = arith.constant 0 : index
    %13 = vector.load %arg2[%c0_8, %c0_9] : memref<8x1xi32, #tpu.memory_space<vmem>>, vector<8x1xi32>
    %14 = vector.broadcast %13 : vector<8x1xi32> to vector<8x16xi32>
    %15 = arith.cmpi eq, %12, %14 : vector<8x16xi32>
    %16 = arith.extui %15 : vector<8x16xi1> to vector<8x16xi32>
    %17 = arith.sitofp %16 : vector<8x16xi32> to vector<8x16xf32>
    %cst = arith.constant dense<0.000000e+00> : vector<8x128xf32>
    %18 = tpu.matmul %11, %0, %cst {dimension_numbers = #tpu.dot_dimension_numbers<[1], [0], [0], [1], [0, 0, 1, 1], [], []>} : vector<8x16xf32>, vector<16x128xf32>, vector<8x128xf32> -> vector<8x128xf32>
    %cst_10 = arith.constant dense<0.000000e+00> : vector<8x128xf32>
    %19 = tpu.matmul %17, %1, %cst_10 {dimension_numbers = #tpu.dot_dimension_numbers<[1], [0], [0], [1], [0, 0, 1, 1], [], []>} : vector<8x16xf32>, vector<16x128xf32>, vector<8x128xf32> -> vector<8x128xf32>
    %20 = arith.addf %18, %19 : vector<8x128xf32>
    %c0_11 = arith.constant 0 : index
    %c0_12 = arith.constant 0 : index
    %21 = vector.load %arg3[%c0_11, %c0_12] : memref<8x8xf32, #tpu.memory_space<vmem>>, vector<8x8xf32>
    %cst_13 = arith.constant dense<0.000000e+00> : vector<8x128xf32>
    %22 = tpu.matmul %21, %2, %cst_13 {dimension_numbers = #tpu.dot_dimension_numbers<[1], [0], [0], [1], [0, 0, 1, 1], [], []>} : vector<8x8xf32>, vector<8x128xf32>, vector<8x128xf32> -> vector<8x128xf32>
    %23 = arith.addf %20, %22 : vector<8x128xf32>
    %24 = vector.broadcast %3 : vector<1x128xf32> to vector<8x128xf32>
    %25 = arith.addf %23, %24 : vector<8x128xf32>
    %cst_14 = arith.constant 0.000000e+00 : f32
    %26 = vector.broadcast %cst_14 : f32 to vector<8x128xf32>
    %27 = arith.maximumf %25, %26 : vector<8x128xf32>
    %28 = vector.broadcast %4 : vector<1x128xf32> to vector<8x128xf32>
    %29 = arith.mulf %27, %28 : vector<8x128xf32>
    %cst_15 = arith.constant dense<0.000000e+00> : vector<8xf32>
    %30 = vector.multi_reduction <add>, %29, %cst_15 [1] : vector<8x128xf32> to vector<8xf32>
    %31 = vector.shape_cast %30 : vector<8xf32> to vector<8x1xf32>
    %32 = vector.broadcast %5 : vector<1x1xf32> to vector<8x1xf32>
    %33 = arith.addf %31, %32 : vector<8x1xf32>
    %c0_16 = arith.constant 0 : index
    %c0_17 = arith.constant 0 : index
    %34 = vector.load %arg5[%c0_16, %c0_17] : memref<8x1xf32, #tpu.memory_space<vmem>>, vector<8x1xf32>
    tpu.vector_store %arg5[%c0_16, %c0_17], %33 {strides = array<i32>} : memref<8x1xf32, #tpu.memory_space<vmem>>, vector<8x1xf32>,
    return
  }
  func.func @transform_0(%arg0: i32) -> (i32, i32) {
    %c0_i32 = arith.constant 0 : i32
    %c0_i32_0 = arith.constant 0 : i32
    return %arg0, %c0_i32 : i32, i32
  }
  func.func @transform_1(%arg0: i32) -> (i32, i32) {
    %c0_i32 = arith.constant 0 : i32
    %c0_i32_0 = arith.constant 0 : i32
    return %arg0, %c0_i32 : i32, i32
  }
  func.func @transform_2(%arg0: i32) -> (i32, i32) {
    %c0_i32 = arith.constant 0 : i32
    %c0_i32_0 = arith.constant 0 : i32
    return %arg0, %c0_i32 : i32, i32
  }
  func.func @transform_3(%arg0: i32) -> (i32, i32) {
    %c0_i32 = arith.constant 0 : i32
    %c0_i32_0 = arith.constant 0 : i32
    %c0_i32_1 = arith.constant 0 : i32
    return %c0_i32, %c0_i32_0 : i32, i32
  }
  func.func @transform_4(%arg0: i32) -> (i32, i32) {
    %c0_i32 = arith.constant 0 : i32
    %c0_i32_0 = arith.constant 0 : i32
    return %arg0, %c0_i32 : i32, i32
  }
}

</mosaic_0001>

<llo_original>
// kernel: forward.1
$region0: #{forward.1}
  #allocation0 [shape = 'u32[]', space=smem, size = 0x4, offset = 0x4, fixed_abs, tag = 'smem constant byte address 0x4 - core index']
  #allocation1 [shape = 'u32[144,128]{1,0:T(1,128)}', space=vmem, size = 0x12000, scoped, tag = 'internal scratch']
  %s0 = inlined_call_operand.vmem [shape: s32[8,1], index: 0, kind: input, shape index: {}]
  %s1 = inlined_call_operand.vmem [shape: s32[8,1], index: 1, kind: input, shape index: {}]
  %s2 = inlined_call_operand.vmem [shape: f32[8,8], index: 2, kind: input, shape index: {}]
  %s3 = inlined_call_operand.vmem [shape: f32[48,128], index: 3, kind: input, shape index: {}]
  %s4 = inlined_call_operand.vmem [shape: f32[8,1], index: 4, kind: output, shape index: {}]
  %s5 = sld [smem:[#allocation0]]
  $region26: #{forward.1} parent=0
    _
  %s7 = ssub.s32 1, %s5
  %s8 = scalar_select 0, %s7, %s5
  // Predicated region
  $region2: #{forward.1} parent=0 // pred_check
    _
  $region3: #{forward.1} parent=0 // pred_check_branch
    %10 = sbr.rel (0) target = $region5
  $region4: #{forward.1} parent=0 // pred_region
    _
  $region5: #{forward.1} parent=0 // pred_fallthru
    _
  // Predicated region
  $region6: #{forward.1} parent=0 // pred_check
    _
  $region7: #{forward.1} parent=0 // pred_check_branch
    %12 = sbr.rel (0) target = $region9
  $region8: #{forward.1} parent=0 // pred_region
    _
  $region9: #{forward.1} parent=0 // pred_fallthru
    _
  // Predicated region
  $region10: #{forward.1} parent=0 // pred_check
    _
  $region11: #{forward.1} parent=0 // pred_check_branch
    %14 = sbr.rel (0) target = $region13
  $region12: #{forward.1} parent=0 // pred_region
    _
  $region13: #{forward.1} parent=0 // pred_fallthru
    _
  // Predicated region
  $region14: #{forward.1} parent=0 // pred_check
    _
  $region15: #{forward.1} parent=0 // pred_check_branch
    %16 = sbr.rel (0) target = $region17
  $region16: #{forward.1} parent=0 // pred_region
    _
  $region17: #{forward.1} parent=0 // pred_fallthru
    _
  %v17 = vld [vmem:[%s3] sm:$0xff]
  %v18 = vld [vmem:[%s3 + $0x8] sm:$0xff]
  %v19 = vld [vmem:[%s3 + $0x10] sm:$0xff]
  %v20 = vld [vmem:[%s3 + $0x18] sm:$0xff]
  %v21 = vld [vmem:[%s3 + $0x20] sm:$0xff]
  %v22 = vld [vmem:[%s3 + $0x28] sm:$0x1]
  %v23 = vld [vmem:[%s3 + $0x29] sm:$0x1]
  %v24 = vld [vmem:[%s3 + $0x2a] sm:$0x1]
  %v25 = vlaneseq
  %v26 = vand.u32 %v25, 127
  %v27 = vld [vmem:[%s0] sm:$0xff]
  %28 = vset.pattern.permute.xlu0 0
  %29 = vperm.xlu0 %28, %v27
  %v30 = vpop.permute.xlu0 %29
  %vm31 = vcmp.eq.s32.totalorder %v26, %v30
  %v32 = vsel %vm31, 1, 0
  %v33 = vcvt.s32.f32 %v32
  %v34 = vld [vmem:[%s1] sm:$0xff]
  %35 = vset.pattern.permute.xlu0 0
  %36 = vperm.xlu0 %35, %v34
  %v37 = vpop.permute.xlu0 %36
  %vm38 = vcmp.eq.s32.totalorder %v26, %v37
  %v39 = vsel %vm38, 1, 0
  %v40 = vcvt.s32.f32 %v39
  %vm41 = vcmask 130048
  %v43 = vsel %vm41, %v40, 0
  %45 = vmatprep.subr.mxu0 0.0
  %46 = vmatpush1.msra.mxu0 %v19
  %47 = vmatprep.subr.mxu0 0.0
  %48 = vmatpush1.msra.mxu0 %v20
  %49 = vmatprep.subr.mxu0 0.0
  %50 = vmatpush1.msra.mxu0 0.0
  %51 = vmatprep.subr.mxu0 0.0
  %52 = vmatpush1.msra.mxu0 0.0
  %53 = vmatprep.subr.mxu0 0.0
  %54 = vmatpush1.msra.mxu0 0.0
  %55 = vmatprep.subr.mxu0 0.0
  %56 = vmatpush1.msra.mxu0 0.0
  %57 = vmatprep.subr.mxu0 0.0
  %58 = vmatpush1.msra.mxu0 0.0
  %59 = vmatprep.subr.mxu0 0.0
  %60 = vmatpush1.msra.mxu0 0.0
  %61 = vmatprep.subr.mxu0 0.0
  %62 = vmatpush1.msra.mxu0 0.0
  %63 = vmatprep.subr.mxu0 0.0
  %64 = vmatpush1.msra.mxu0 0.0
  %65 = vmatprep.subr.mxu0 0.0
  %66 = vmatpush1.msra.mxu0 0.0
  %67 = vmatprep.subr.mxu0 0.0
  %68 = vmatpush1.msra.mxu0 0.0
  %69 = vmatprep.subr.mxu0 0.0
  %70 = vmatpush1.msra.mxu0 0.0
  %71 = vmatprep.subr.mxu0 0.0
  %72 = vmatpush1.msra.mxu0 0.0
  %73 = vmatprep.subr.mxu0 0.0
  %74 = vmatpush1.msra.mxu0 0.0
  %75 = vmatprep.subr.mxu0 0.0
  %76 = vmatpush1.msra.mxu0 0.0
  %77 = vmatprep.subr.mxu0 0.0
  %78 = vmatpush1.msra.mxu0 0.0
  %79 = vmatprep.subr.mxu0 0.0
  %80 = vmatpush1.msra.mxu0 0.0
  %81 = vmatprep.subr.mxu0 0.0
  %82 = vmatpush1.msra.mxu0 0.0
  %83 = vmatprep.subr.mxu0 0.0
  %84 = vmatpush1.msra.mxu0 0.0
  %85 = vmatprep.subr.mxu0 0.0
  %86 = vmatpush1.msra.mxu0 0.0
  %87 = vmatprep.subr.mxu0 0.0
  %88 = vmatpush1.msra.mxu0 0.0
  %89 = vmatprep.subr.mxu0 0.0
  %90 = vmatpush1.msra.mxu0 0.0
  %91 = vmatprep.subr.mxu0 0.0
  %92 = vmatpush1.msra.mxu0 0.0
  %93 = vmatprep.subr.mxu0 0.0
  %94 = vmatpush1.msra.mxu0 0.0
  %95 = vmatprep.subr.mxu0 0.0
  %96 = vmatpush1.msra.mxu0 0.0
  %97 = vmatprep.subr.mxu0 0.0
  %98 = vmatpush1.msra.mxu0 0.0
  %99 = vmatprep.subr.mxu0 0.0
  %100 = vmatpush1.msra.mxu0 0.0
  %101 = vmatprep.subr.mxu0 0.0
  %102 = vmatpush1.msra.mxu0 0.0
  %103 = vmatprep.subr.mxu0 0.0
  %104 = vmatpush1.msra.mxu0 0.0
  %105 = vmatprep.subr.mxu0 0.0
  %106 = vmatpush1.msra.mxu0 0.0
  %107 = vmatprep.subr.mxu0 0.0
  %108 = vmatpush1.msra.mxu0 0.0
  %109 = vmatprep.mubr.f32.mxu0 0.0
  %110 = vmatmul.mubr.f32.gmra.mrb[0].mxu0 %v43
  %v111 = vpop.f32.mrb[0].mxu0
  %v112 = vadd.f32 0.0, %v111
  %v113 = vpop.f32.mrb[0].mxu0
  %114 = vdwg.mxu0
  %v116 = vsel %vm41, %v33, 0
  %118 = vmatprep.subr.mxu0 0.0
  %119 = vmatpush1.msra.mxu0 %v17
  %120 = vmatprep.subr.mxu0 0.0
  %121 = vmatpush1.msra.mxu0 %v18
  %122 = vmatprep.subr.mxu0 0.0
  %123 = vmatpush1.msra.mxu0 0.0
  %124 = vmatprep.subr.mxu0 0.0
  %125 = vmatpush1.msra.mxu0 0.0
  %126 = vmatprep.subr.mxu0 0.0
  %127 = vmatpush1.msra.mxu0 0.0
  %128 = vmatprep.subr.mxu0 0.0
  %129 = vmatpush1.msra.mxu0 0.0
  %130 = vmatprep.subr.mxu0 0.0
  %131 = vmatpush1.msra.mxu0 0.0
  %132 = vmatprep.subr.mxu0 0.0
  %133 = vmatpush1.msra.mxu0 0.0
  %134 = vmatprep.subr.mxu0 0.0
  %135 = vmatpush1.msra.mxu0 0.0
  %136 = vmatprep.subr.mxu0 0.0
  %137 = vmatpush1.msra.mxu0 0.0
  %138 = vmatprep.subr.mxu0 0.0
  %139 = vmatpush1.msra.mxu0 0.0
  %140 = vmatprep.subr.mxu0 0.0
  %141 = vmatpush1.msra.mxu0 0.0
  %142 = vmatprep.subr.mxu0 0.0
  %143 = vmatpush1.msra.mxu0 0.0
  %144 = vmatprep.subr.mxu0 0.0
  %145 = vmatpush1.msra.mxu0 0.0
  %146 = vmatprep.subr.mxu0 0.0
  %147 = vmatpush1.msra.mxu0 0.0
  %148 = vmatprep.subr.mxu0 0.0
  %149 = vmatpush1.msra.mxu0 0.0
  %150 = vmatprep.subr.mxu0 0.0
  %151 = vmatpush1.msra.mxu0 0.0
  %152 = vmatprep.subr.mxu0 0.0
  %153 = vmatpush1.msra.mxu0 0.0
  %154 = vmatprep.subr.mxu0 0.0
  %155 = vmatpush1.msra.mxu0 0.0
  %156 = vmatprep.subr.mxu0 0.0
  %157 = vmatpush1.msra.mxu0 0.0
  %158 = vmatprep.subr.mxu0 0.0
  %159 = vmatpush1.msra.mxu0 0.0
  %160 = vmatprep.subr.mxu0 0.0
  %161 = vmatpush1.msra.mxu0 0.0
  %162 = vmatprep.subr.mxu0 0.0
  %163 = vmatpush1.msra.mxu0 0.0
  %164 = vmatprep.subr.mxu0 0.0
  %165 = vmatpush1.msra.mxu0 0.0
  %166 = vmatprep.subr.mxu0 0.0
  %167 = vmatpush1.msra.mxu0 0.0
  %168 = vmatprep.subr.mxu0 0.0
  %169 = vmatpush1.msra.mxu0 0.0
  %170 = vmatprep.subr.mxu0 0.0
  %171 = vmatpush1.msra.mxu0 0.0
  %172 = vmatprep.subr.mxu0 0.0
  %173 = vmatpush1.msra.mxu0 0.0
  %174 = vmatprep.subr.mxu0 0.0
  %175 = vmatpush1.msra.mxu0 0.0
  %176 = vmatprep.subr.mxu0 0.0
  %177 = vmatpush1.msra.mxu0 0.0
  %178 = vmatprep.subr.mxu0 0.0
  %179 = vmatpush1.msra.mxu0 0.0
  %180 = vmatprep.subr.mxu0 0.0
  %181 = vmatpush1.msra.mxu0 0.0
  %182 = vmatprep.mubr.f32.mxu0 0.0
  %183 = vmatmul.mubr.f32.gmra.mrb[0].mxu0 %v116
  %v184 = vpop.f32.mrb[0].mxu0
  %v185 = vadd.f32 %v112, %v184
  %v186 = vpop.f32.mrb[0].mxu0
  %187 = vdwg.mxu0
  %v188 = vld [vmem:[%s2] sm:$0xff]
  %vm189 = vcmask 64512
  %v191 = vsel %vm189, %v188, 0
  %193 = vmatprep.subr.mxu0 0.0
  %194 = vmatpush1.msra.mxu0 %v21
  %195 = vmatprep.subr.mxu0 0.0
  %196 = vmatpush1.msra.mxu0 0.0
  %197 = vmatprep.subr.mxu0 0.0
  %198 = vmatpush1.msra.mxu0 0.0
  %199 = vmatprep.subr.mxu0 0.0
  %200 = vmatpush1.msra.mxu0 0.0
  %201 = vmatprep.subr.mxu0 0.0
  %202 = vmatpush1.msra.mxu0 0.0
  %203 = vmatprep.subr.mxu0 0.0
  %204 = vmatpush1.msra.mxu0 0.0
  %205 = vmatprep.subr.mxu0 0.0
  %206 = vmatpush1.msra.mxu0 0.0
  %207 = vmatprep.subr.mxu0 0.0
  %208 = vmatpush1.msra.mxu0 0.0
  %209 = vmatprep.subr.mxu0 0.0
  %210 = vmatpush1.msra.mxu0 0.0
  %211 = vmatprep.subr.mxu0 0.0
  %212 = vmatpush1.msra.mxu0 0.0
  %213 = vmatprep.subr.mxu0 0.0
  %214 = vmatpush1.msra.mxu0 0.0
  %215 = vmatprep.subr.mxu0 0.0
  %216 = vmatpush1.msra.mxu0 0.0
  %217 = vmatprep.subr.mxu0 0.0
  %218 = vmatpush1.msra.mxu0 0.0
  %219 = vmatprep.subr.mxu0 0.0
  %220 = vmatpush1.msra.mxu0 0.0
  %221 = vmatprep.subr.mxu0 0.0
  %222 = vmatpush1.msra.mxu0 0.0
  %223 = vmatprep.subr.mxu0 0.0
  %224 = vmatpush1.msra.mxu0 0.0
  %225 = vmatprep.subr.mxu0 0.0
  %226 = vmatpush1.msra.mxu0 0.0
  %227 = vmatprep.subr.mxu0 0.0
  %228 = vmatpush1.msra.mxu0 0.0
  %229 = vmatprep.subr.mxu0 0.0
  %230 = vmatpush1.msra.mxu0 0.0
  %231 = vmatprep.subr.mxu0 0.0
  %232 = vmatpush1.msra.mxu0 0.0
  %233 = vmatprep.subr.mxu0 0.0
  %234 = vmatpush1.msra.mxu0 0.0
  %235 = vmatprep.subr.mxu0 0.0
  %236 = vmatpush1.msra.mxu0 0.0
  %237 = vmatprep.subr.mxu0 0.0
  %238 = vmatpush1.msra.mxu0 0.0
  %239 = vmatprep.subr.mxu0 0.0
  %240 = vmatpush1.msra.mxu0 0.0
  %241 = vmatprep.subr.mxu0 0.0
  %242 = vmatpush1.msra.mxu0 0.0
  %243 = vmatprep.subr.mxu0 0.0
  %244 = vmatpush1.msra.mxu0 0.0
  %245 = vmatprep.subr.mxu0 0.0
  %246 = vmatpush1.msra.mxu0 0.0
  %247 = vmatprep.subr.mxu0 0.0
  %248 = vmatpush1.msra.mxu0 0.0
  %249 = vmatprep.subr.mxu0 0.0
  %250 = vmatpush1.msra.mxu0 0.0
  %251 = vmatprep.subr.mxu0 0.0
  %252 = vmatpush1.msra.mxu0 0.0
  %253 = vmatprep.subr.mxu0 0.0
  %254 = vmatpush1.msra.mxu0 0.0
  %255 = vmatprep.subr.mxu0 0.0
  %256 = vmatpush1.msra.mxu0 0.0
  %257 = vmatprep.mubr.f32.mxu0 0.0
  %258 = vmatmul.mubr.f32.gmra.mrb[0].mxu0 %v191
  %v259 = vpop.f32.mrb[0].mxu0
  %v260 = vadd.f32 0.0, %v259
  %v261 = vpop.f32.mrb[0].mxu0
  %262 = vdwg.mxu0
  %v263 = vadd.f32 %v185, %v260
  %v264 = vlaneseq
  %v265 = vshrl.u32 %v264, 7
  %v266 = vsub.s32 0, %v265
  %v267 = vrot.slane %v22, %v266
  %v268 = vadd.f32 %v263, %v267
  %v269 = vmax.f32 %v268, 0.0
  %v270 = vlaneseq
  %v271 = vshrl.u32 %v270, 7
  %v272 = vsub.s32 0, %v271
  %v273 = vrot.slane %v23, %v272
  %v274 = vmul.f32 %v269, %v273
  %275 = vadd.xlane.f32.xlu0 %v274
  %v276 = vpop.xlane.xlu0 %275
  %v277 = vlaneseq
  %v278 = vshrl.u32 %v277, 7
  %v279 = vsub.s32 0, %v278
  %v280 = vrot.slane %v24, %v279
  %v281 = vadd.f32 %v276, %v280
  %vm282 = vcmask 7168
  %283 = vst.msk [vmem:[%s4] sm:$0xff] %vm282, %v281
  // Predicated region
  $region18: #{forward.1} parent=0 // pred_check
    _
  $region19: #{forward.1} parent=0 // pred_check_branch
    %285 = sbr.rel (0) target = $region21
  $region20: #{forward.1} parent=0 // pred_region
    _
  $region21: #{forward.1} parent=0 // pred_fallthru
    _
  // Predicated region
  $region22: #{forward.1} parent=0 // pred_check
    _
  $region23: #{forward.1} parent=0 // pred_check_branch
    %287 = sbr.rel (0) target = $region25
  $region24: #{forward.1} parent=0 // pred_region
    _
  $region25: #{forward.1} parent=0 // pred_fallthru
    _

</llo_original>
